<compile_context>
chip_gen: v6e
topology: v6e:2x2x1
jax: 0.10.0
libtpu: 0.0.40
codegen_flags: <defaults>
</compile_context>

<pallas_src>
import jax
import jax.numpy as jnp
from jax.experimental import pallas as pl
from jax.experimental.pallas import tpu as pltpu


def _round_up(x, m):
    return ((x + m - 1) // m) * m


def _mlp_kernel(x_ref, w1_ref, b1_ref, w2_ref, b2_ref, w3_ref, b3_ref, o_ref):
    """Fused 3-layer MLP: relu(relu(x@W1+b1)@W2+b2)@W3+b3.

    Matmul operands are cast to the weight dtype (bf16 on the fast path,
    f32 on the exact path); accumulation, bias add and ReLU are f32.
    """
    cdt = w1_ref.dtype
    x = x_ref[...].astype(cdt)
    h1 = jnp.dot(x, w1_ref[...], preferred_element_type=jnp.float32) + b1_ref[...]
    h1 = jnp.maximum(h1, 0.0).astype(cdt)
    h2 = jnp.dot(h1, w2_ref[...], preferred_element_type=jnp.float32) + b2_ref[...]
    h2 = jnp.maximum(h2, 0.0).astype(cdt)
    out = jnp.dot(h2, w3_ref[...], preferred_element_type=jnp.float32) + b3_ref[...]
    o_ref[...] = out.astype(o_ref.dtype)


def dmodel_forward(state, params, *, use_bf16=True, tile_b=None,
                   max_tile_b=2048, min_split_rows=1024):
    """Pallas forward pass of Dmodel.

    state:  [B, action_dim] float32
    params: dict with w1 [A,256], b1 [1,256], w2 [256,64], b2 [1,64],
            w3 [64,2], b3 [1,2]  (all float32, stored [in, out])
    returns [B, 2] float32
    """
    B, A = state.shape
    w1, b1 = params["w1"], params["b1"]
    w2, b2 = params["w2"], params["b2"]
    w3, b3 = params["w3"], params["b3"]
    H1, H2, O = w1.shape[1], w2.shape[1], w3.shape[1]

    if use_bf16:
        # MXU-native operand dtype; biases stay f32 (added to f32 accumulators).
        w1 = w1.astype(jnp.bfloat16)
        w2 = w2.astype(jnp.bfloat16)
        w3 = w3.astype(jnp.bfloat16)

    # ---- batch tile selection ------------------------------------------------
    # Large tiles amortize the ~0.35us/grid-step overhead; weights are resident
    # so VMEM is not a constraint at these sizes (worst case ~9 MB, under the
    # default scoped-VMEM limit on v5e/v6e/v7x).  Once the batch is mid-sized we
    # force >= 2 tiles so the "parallel" axis shards across v7x's two TCs.
    b8 = _round_up(B, 8)
    if tile_b is not None:
        tile_b = _round_up(min(tile_b, b8), 8)
    else:
        n_tiles = max(2, pl.cdiv(b8, max_tile_b)) if b8 >= min_split_rows else 1
        tile_b = _round_up(pl.cdiv(b8, n_tiles), 8)
    grid = pl.cdiv(B, tile_b)  # last block may overhang; Pallas clips writeback

    # Advisory cost hint: cheap, memory-light op (lets XLA overlap it freely).
    weight_bytes = sum(int(v.size) * v.dtype.itemsize
                       for v in (w1, b1, w2, b2, w3, b3))
    cost = pl.CostEstimate(
        flops=2 * grid * tile_b * (A * H1 + H1 * H2 + H2 * O),
        transcendentals=0,
        bytes_accessed=B * A * state.dtype.itemsize + B * O * 4 + weight_bytes,
    )

    return pl.pallas_call(
        _mlp_kernel,
        out_shape=jax.ShapeDtypeStruct((B, O), jnp.float32),
        grid_spec=pltpu.PrefetchScalarGridSpec(
            num_scalar_prefetch=0,
            grid=(grid,),
            in_specs=[
                pl.BlockSpec((tile_b, A), lambda i: (i, 0)),   # x tile (streamed)
                pl.BlockSpec((A, H1), lambda i: (0, 0)),       # W1 (resident)
                pl.BlockSpec((1, H1), lambda i: (0, 0)),       # b1
                pl.BlockSpec((H1, H2), lambda i: (0, 0)),      # W2
                pl.BlockSpec((1, H2), lambda i: (0, 0)),       # b2
                pl.BlockSpec((H2, O), lambda i: (0, 0)),       # W3
                pl.BlockSpec((1, O), lambda i: (0, 0)),        # b3
            ],
            out_specs=pl.BlockSpec((tile_b, O), lambda i: (i, 0)),
        ),
        compiler_params=pltpu.CompilerParams(
            dimension_semantics=("parallel",),
        ),
        cost_estimate=cost,
    )(state, w1, b1, w2, b2, w3, b3)


def dmodel_forward_auto(state, params, *, min_pallas_batch=512, **kw):
    """At tiny batch the fixed pallas_call launch cost exceeds the whole MLP's
    compute, so fall back to fused XLA."""
    if state.shape[0] < min_pallas_batch:
        return dmodel_reference(state, params)
    return dmodel_forward(state, params, **kw)


def init_params(key, action_dim):
    """Deterministic synthetic parameters (PyTorch-Linear-style uniform init)."""
    def linear(k, fan_in, fan_out):
        kw, kb = jax.random.split(k)
        bound = 1.0 / jnp.sqrt(fan_in)
        # stored as [in, out] so the kernel computes x @ W + b (== x @ W_pt.T + b)
        w = jax.random.uniform(kw, (fan_in, fan_out), jnp.float32, -bound, bound)
        b = jax.random.uniform(kb, (1, fan_out), jnp.float32, -bound, bound)
        return w, b

    k1, k2, k3 = jax.random.split(key, 3)
    w1, b1 = linear(k1, action_dim, 256)
    w2, b2 = linear(k2, 256, 64)
    w3, b3 = linear(k3, 64, 2)
    return dict(w1=w1, b1=b1, w2=w2, b2=b2, w3=w3, b3=b3)


def dmodel_reference(state, params):
    h1 = jnp.maximum(state @ params["w1"] + params["b1"], 0.0)
    h2 = jnp.maximum(h1 @ params["w2"] + params["b2"], 0.0)
    return h2 @ params["w3"] + params["b3"]


if __name__ == "__main__":
    key = jax.random.PRNGKey(0)
    k_param, k_x = jax.random.split(key)

    batch = 8
    action_dim = 16  # opt.action_dim (input dim of state_fc)

    params = init_params(k_param, action_dim)
    state = jax.random.normal(k_x, (batch, action_dim), dtype=jnp.float32)
    ref = dmodel_reference(state, params)

    # Exact f32 path: bit-level compatible with the f32 reference.
    out_f32 = jax.block_until_ready(dmodel_forward(state, params, use_bf16=False))
    assert out_f32.shape == (batch, 2), out_f32.shape
    assert jnp.allclose(out_f32, ref, atol=1e-5, rtol=1e-5), "f32 path mismatch"

    # Default fast path: bf16 matmuls, f32 accumulation (looser tolerance).
    out_bf16 = jax.block_until_ready(dmodel_forward(state, params))
    assert out_bf16.shape == (batch, 2), out_bf16.shape
    assert jnp.allclose(out_bf16, ref, atol=1e-1, rtol=5e-2), "bf16 path mismatch"

    # Non-divisible batch: exercises the overhanging last grid block
    # (no wrapper pad/slice) with a multi-step grid.
    state2 = jax.random.normal(jax.random.PRNGKey(1), (37, action_dim), jnp.float32)
    ref2 = dmodel_reference(state2, params)
    out2 = jax.block_until_ready(
        dmodel_forward(state2, params, use_bf16=False, tile_b=16))
    assert out2.shape == (37, 2), out2.shape
    assert jnp.allclose(out2, ref2, atol=1e-5, rtol=1e-5), "overhang path mismatch"

    print("KERNEL_OK")
</pallas_src>

<mosaic_0001>
module attributes {stable_mosaic.version = 11 : i64} {
  func.func @_mlp_kernel(%arg0: i32, %arg1: memref<8x16xf32, #tpu.memory_space<vmem>>, %arg2: memref<16x256xf32, #tpu.memory_space<vmem>>, %arg3: memref<1x256xf32, #tpu.memory_space<vmem>>, %arg4: memref<256x64xf32, #tpu.memory_space<vmem>>, %arg5: memref<1x64xf32, #tpu.memory_space<vmem>>, %arg6: memref<64x2xf32, #tpu.memory_space<vmem>>, %arg7: memref<1x2xf32, #tpu.memory_space<vmem>>, %arg8: memref<8x2xf32, #tpu.memory_space<vmem>>) attributes {dimension_semantics = [#tpu.dimension_semantics<parallel>], iteration_bounds = array<i64: 1>, scalar_prefetch = 0 : i64, scratch_operands = 0 : i64, tpu.core_type = #tpu.core_type<tc>, window_params = [{transform_indices = @transform_0, window_bounds = array<i64: 8, 16>}, {pipeline_mode = #tpu.pipeline_mode<synchronous>, transform_indices = @transform_1, window_bounds = array<i64: 16, 256>}, {pipeline_mode = #tpu.pipeline_mode<synchronous>, transform_indices = @transform_2, window_bounds = array<i64: 1, 256>}, {pipeline_mode = #tpu.pipeline_mode<synchronous>, transform_indices = @transform_3, window_bounds = array<i64: 256, 64>}, {pipeline_mode = #tpu.pipeline_mode<synchronous>, transform_indices = @transform_4, window_bounds = array<i64: 1, 64>}, {pipeline_mode = #tpu.pipeline_mode<synchronous>, transform_indices = @transform_5, window_bounds = array<i64: 64, 2>}, {pipeline_mode = #tpu.pipeline_mode<synchronous>, transform_indices = @transform_6, window_bounds = array<i64: 1, 2>}, {transform_indices = @transform_7, window_bounds = array<i64: 8, 2>}]} {
    %c0 = arith.constant 0 : index
    %c0_0 = arith.constant 0 : index
    %0 = vector.load %arg1[%c0, %c0_0] : memref<8x16xf32, #tpu.memory_space<vmem>>, vector<8x16xf32>
    %c0_1 = arith.constant 0 : index
    %c0_2 = arith.constant 0 : index
    %1 = vector.load %arg2[%c0_1, %c0_2] : memref<16x256xf32, #tpu.memory_space<vmem>>, vector<16x256xf32>
    %cst = arith.constant dense<0.000000e+00> : vector<8x256xf32>
    %2 = tpu.matmul %0, %1, %cst {dimension_numbers = #tpu.dot_dimension_numbers<[1], [0], [0], [1], [0, 0, 1, 1], [], []>} : vector<8x16xf32>, vector<16x256xf32>, vector<8x256xf32> -> vector<8x256xf32>
    %c0_3 = arith.constant 0 : index
    %c0_4 = arith.constant 0 : index
    %3 = vector.load %arg3[%c0_3, %c0_4] : memref<1x256xf32, #tpu.memory_space<vmem>>, vector<1x256xf32>
    %4 = vector.broadcast %3 : vector<1x256xf32> to vector<8x256xf32>
    %5 = arith.addf %2, %4 : vector<8x256xf32>
    %cst_5 = arith.constant 0.000000e+00 : f32
    %6 = vector.broadcast %cst_5 : f32 to vector<8x256xf32>
    %7 = arith.maximumf %5, %6 : vector<8x256xf32>
    %c0_6 = arith.constant 0 : index
    %c0_7 = arith.constant 0 : index
    %8 = vector.load %arg4[%c0_6, %c0_7] : memref<256x64xf32, #tpu.memory_space<vmem>>, vector<256x64xf32>
    %cst_8 = arith.constant dense<0.000000e+00> : vector<8x64xf32>
    %9 = tpu.matmul %7, %8, %cst_8 {dimension_numbers = #tpu.dot_dimension_numbers<[1], [0], [0], [1], [0, 0, 1, 1], [], []>} : vector<8x256xf32>, vector<256x64xf32>, vector<8x64xf32> -> vector<8x64xf32>
    %c0_9 = arith.constant 0 : index
    %c0_10 = arith.constant 0 : index
    %10 = vector.load %arg5[%c0_9, %c0_10] : memref<1x64xf32, #tpu.memory_space<vmem>>, vector<1x64xf32>
    %11 = vector.broadcast %10 : vector<1x64xf32> to vector<8x64xf32>
    %12 = arith.addf %9, %11 : vector<8x64xf32>
    %cst_11 = arith.constant 0.000000e+00 : f32
    %13 = vector.broadcast %cst_11 : f32 to vector<8x64xf32>
    %14 = arith.maximumf %12, %13 : vector<8x64xf32>
    %c0_12 = arith.constant 0 : index
    %c0_13 = arith.constant 0 : index
    %15 = vector.load %arg6[%c0_12, %c0_13] : memref<64x2xf32, #tpu.memory_space<vmem>>, vector<64x2xf32>
    %cst_14 = arith.constant dense<0.000000e+00> : vector<8x2xf32>
    %16 = tpu.matmul %14, %15, %cst_14 {dimension_numbers = #tpu.dot_dimension_numbers<[1], [0], [0], [1], [0, 0, 1, 1], [], []>} : vector<8x64xf32>, vector<64x2xf32>, vector<8x2xf32> -> vector<8x2xf32>
    %c0_15 = arith.constant 0 : index
    %c0_16 = arith.constant 0 : index
    %17 = vector.load %arg7[%c0_15, %c0_16] : memref<1x2xf32, #tpu.memory_space<vmem>>, vector<1x2xf32>
    %18 = vector.broadcast %17 : vector<1x2xf32> to vector<8x2xf32>
    %19 = arith.addf %16, %18 : vector<8x2xf32>
    %c0_17 = arith.constant 0 : index
    %c0_18 = arith.constant 0 : index
    %20 = vector.load %arg8[%c0_17, %c0_18] : memref<8x2xf32, #tpu.memory_space<vmem>>, vector<8x2xf32>
    tpu.vector_store %arg8[%c0_17, %c0_18], %19 {strides = array<i32>} : memref<8x2xf32, #tpu.memory_space<vmem>>, vector<8x2xf32>,
    return
  }
  func.func @transform_0(%arg0: i32) -> (i32, i32) {
    %c0_i32 = arith.constant 0 : i32
    %c0_i32_0 = arith.constant 0 : i32
    return %arg0, %c0_i32 : i32, i32
  }
  func.func @transform_1(%arg0: i32) -> (i32, i32) {
    %c0_i32 = arith.constant 0 : i32
    %c0_i32_0 = arith.constant 0 : i32
    %c0_i32_1 = arith.constant 0 : i32
    return %c0_i32, %c0_i32_0 : i32, i32
  }
  func.func @transform_2(%arg0: i32) -> (i32, i32) {
    %c0_i32 = arith.constant 0 : i32
    %c0_i32_0 = arith.constant 0 : i32
    %c0_i32_1 = arith.constant 0 : i32
    return %c0_i32, %c0_i32_0 : i32, i32
  }
  func.func @transform_3(%arg0: i32) -> (i32, i32) {
    %c0_i32 = arith.constant 0 : i32
    %c0_i32_0 = arith.constant 0 : i32
    %c0_i32_1 = arith.constant 0 : i32
    return %c0_i32, %c0_i32_0 : i32, i32
  }
  func.func @transform_4(%arg0: i32) -> (i32, i32) {
    %c0_i32 = arith.constant 0 : i32
    %c0_i32_0 = arith.constant 0 : i32
    %c0_i32_1 = arith.constant 0 : i32
    return %c0_i32, %c0_i32_0 : i32, i32
  }
  func.func @transform_5(%arg0: i32) -> (i32, i32) {
    %c0_i32 = arith.constant 0 : i32
    %c0_i32_0 = arith.constant 0 : i32
    %c0_i32_1 = arith.constant 0 : i32
    return %c0_i32, %c0_i32_0 : i32, i32
  }
  func.func @transform_6(%arg0: i32) -> (i32, i32) {
    %c0_i32 = arith.constant 0 : i32
    %c0_i32_0 = arith.constant 0 : i32
    %c0_i32_1 = arith.constant 0 : i32
    return %c0_i32, %c0_i32_0 : i32, i32
  }
  func.func @transform_7(%arg0: i32) -> (i32, i32) {
    %c0_i32 = arith.constant 0 : i32
    %c0_i32_0 = arith.constant 0 : i32
    return %arg0, %c0_i32 : i32, i32
  }
}

</mosaic_0001>

<llo_original>
// kernel: tpu_custom_call.1
$region0: #{tpu_custom_call.1}
  #allocation0 [shape = 'u32[]', space=smem, size = 0x4, offset = 0x4, fixed_abs, tag = 'smem constant byte address 0x4 - core index']
  #allocation1 [shape = 'u32[144,128]{1,0:T(1,128)}', space=vmem, size = 0x12000, scoped, tag = 'internal scratch']
  %s0 = inlined_call_operand.vmem [shape: f32[8,16], index: 0, kind: input, shape index: {}]
  %s1 = inlined_call_operand.vmem [shape: f32[16,256], index: 1, kind: input, shape index: {}]
  %s2 = inlined_call_operand.vmem [shape: f32[1,256], index: 2, kind: input, shape index: {}]
  %s3 = inlined_call_operand.vmem [shape: f32[256,64], index: 3, kind: input, shape index: {}]
  %s4 = inlined_call_operand.vmem [shape: f32[1,64], index: 4, kind: input, shape index: {}]
  %s5 = inlined_call_operand.vmem [shape: f32[64,2], index: 5, kind: input, shape index: {}]
  %s6 = inlined_call_operand.vmem [shape: f32[1,2], index: 6, kind: input, shape index: {}]
  %s7 = inlined_call_operand.vmem [shape: f32[8,2], index: 7, kind: output, shape index: {}]
  %s8 = sld [smem:[#allocation0]]
  $region38: #{tpu_custom_call.1} parent=0
    _
  %s10 = ssub.s32 1, %s8
  %s11 = scalar_select 0, %s10, %s8
  // Predicated region
  $region2: #{tpu_custom_call.1} parent=0 // pred_check
    _
  $region3: #{tpu_custom_call.1} parent=0 // pred_check_branch
    %13 = sbr.rel (0) target = $region5
  $region4: #{tpu_custom_call.1} parent=0 // pred_region
    _
  $region5: #{tpu_custom_call.1} parent=0 // pred_fallthru
    _
  // Predicated region
  $region6: #{tpu_custom_call.1} parent=0 // pred_check
    _
  $region7: #{tpu_custom_call.1} parent=0 // pred_check_branch
    %15 = sbr.rel (0) target = $region9
  $region8: #{tpu_custom_call.1} parent=0 // pred_region
    _
  $region9: #{tpu_custom_call.1} parent=0 // pred_fallthru
    _
  // Predicated region
  $region10: #{tpu_custom_call.1} parent=0 // pred_check
    _
  $region11: #{tpu_custom_call.1} parent=0 // pred_check_branch
    %17 = sbr.rel (0) target = $region13
  $region12: #{tpu_custom_call.1} parent=0 // pred_region
    _
  $region13: #{tpu_custom_call.1} parent=0 // pred_fallthru
    _
  // Predicated region
  $region14: #{tpu_custom_call.1} parent=0 // pred_check
    _
  $region15: #{tpu_custom_call.1} parent=0 // pred_check_branch
    %19 = sbr.rel (0) target = $region17
  $region16: #{tpu_custom_call.1} parent=0 // pred_region
    _
  $region17: #{tpu_custom_call.1} parent=0 // pred_fallthru
    _
  // Predicated region
  $region18: #{tpu_custom_call.1} parent=0 // pred_check
    _
  $region19: #{tpu_custom_call.1} parent=0 // pred_check_branch
    %21 = sbr.rel (0) target = $region21
  $region20: #{tpu_custom_call.1} parent=0 // pred_region
    _
  $region21: #{tpu_custom_call.1} parent=0 // pred_fallthru
    _
  // Predicated region
  $region22: #{tpu_custom_call.1} parent=0 // pred_check
    _
  $region23: #{tpu_custom_call.1} parent=0 // pred_check_branch
    %23 = sbr.rel (0) target = $region25
  $region24: #{tpu_custom_call.1} parent=0 // pred_region
    _
  $region25: #{tpu_custom_call.1} parent=0 // pred_fallthru
    _
  // Predicated region
  $region26: #{tpu_custom_call.1} parent=0 // pred_check
    _
  $region27: #{tpu_custom_call.1} parent=0 // pred_check_branch
    %25 = sbr.rel (0) target = $region29
  $region28: #{tpu_custom_call.1} parent=0 // pred_region
    _
  $region29: #{tpu_custom_call.1} parent=0 // pred_fallthru
    _
  %v26 = vld [vmem:[%s0] sm:$0xff]
  %v27 = vld [vmem:[%s1] sm:$0xff]
  %v28 = vld [vmem:[%s1 + $0x8] sm:$0xff]
  %v29 = vld [vmem:[%s1 + $0x10] sm:$0xff]
  %v30 = vld [vmem:[%s1 + $0x18] sm:$0xff]
  %v31 = vld [vmem:[%s2] sm:$0x3]
  %v33 = vlaneseq
  %v34 = vshrl.u32 %v33, 7
  %v35 = vsub.s32 0, %v34
  %v36 = vrot.slane %v31, %v35
  %v37 = vlaneseq
  %v38 = vshrl.u32 %v37, 7
  %v39 = vsub.s32 1, %v38
  %v40 = vrot.slane %v31, %v39
  %vm43 = vcmask 130048
  %v45 = vsel %vm43, %v26, 0
  %47 = vmatprep.subr.mxu0 0.0
  %48 = vmatpush1.msra.mxu0 0.0
  %49 = vmatprep.subr.mxu0 0.0
  %50 = vmatpush1.msra.mxu0 0.0
  %51 = vmatprep.subr.mxu0 0.0
  %52 = vmatpush1.msra.mxu0 0.0
  %53 = vmatprep.subr.mxu0 0.0
  %54 = vmatpush1.msra.mxu0 0.0
  %55 = vmatprep.subr.mxu0 0.0
  %56 = vmatpush1.msra.mxu0 0.0
  %57 = vmatprep.subr.mxu0 0.0
  %58 = vmatpush1.msra.mxu0 0.0
  %59 = vmatprep.subr.mxu0 0.0
  %60 = vmatpush1.msra.mxu0 0.0
  %61 = vmatprep.subr.mxu0 0.0
  %62 = vmatpush1.msra.mxu0 0.0
  %63 = vmatprep.subr.mxu0 0.0
  %64 = vmatpush1.msra.mxu0 0.0
  %65 = vmatprep.subr.mxu0 0.0
  %66 = vmatpush1.msra.mxu0 0.0
  %67 = vmatprep.subr.mxu0 0.0
  %68 = vmatpush1.msra.mxu0 0.0
  %69 = vmatprep.subr.mxu0 0.0
  %70 = vmatpush1.msra.mxu0 0.0
  %71 = vmatprep.subr.mxu0 0.0
  %72 = vmatpush1.msra.mxu0 0.0
  %73 = vmatprep.subr.mxu0 0.0
  %74 = vmatpush1.msra.mxu0 0.0
  %75 = vmatprep.subr.mxu0 %v30
  %76 = vmatpush1.msra.mxu0 %v29
  %77 = vmatprep.subr.mxu0 %v28
  %78 = vmatpush1.msra.mxu0 %v27
  %79 = vmatprep.subr.mxu0 0.0
  %80 = vmatpush2.msra.mxu0 0.0
  %81 = vmatprep.subr.mxu0 0.0
  %82 = vmatpush2.msra.mxu0 0.0
  %83 = vmatprep.subr.mxu0 0.0
  %84 = vmatpush2.msra.mxu0 0.0
  %85 = vmatprep.subr.mxu0 0.0
  %86 = vmatpush2.msra.mxu0 0.0
  %87 = vmatprep.subr.mxu0 0.0
  %88 = vmatpush2.msra.mxu0 0.0
  %89 = vmatprep.subr.mxu0 0.0
  %90 = vmatpush2.msra.mxu0 0.0
  %91 = vmatprep.subr.mxu0 0.0
  %92 = vmatpush2.msra.mxu0 0.0
  %93 = vmatprep.subr.mxu0 0.0
  %94 = vmatpush2.msra.mxu0 0.0
  %95 = vmatprep.subr.mxu0 0.0
  %96 = vmatpush2.msra.mxu0 0.0
  %97 = vmatprep.subr.mxu0 0.0
  %98 = vmatpush2.msra.mxu0 0.0
  %99 = vmatprep.subr.mxu0 0.0
  %100 = vmatpush2.msra.mxu0 0.0
  %101 = vmatprep.subr.mxu0 0.0
  %102 = vmatpush2.msra.mxu0 0.0
  %103 = vmatprep.subr.mxu0 0.0
  %104 = vmatpush2.msra.mxu0 0.0
  %105 = vmatprep.subr.mxu0 0.0
  %106 = vmatpush2.msra.mxu0 0.0
  %107 = vmatprep.subr.mxu0 0.0
  %108 = vmatpush2.msra.mxu0 0.0
  %109 = vmatprep.subr.mxu0 0.0
  %110 = vmatpush2.msra.mxu0 0.0
  %111 = vmatprep.mubr.f32.mxu0 0.0
  %112 = vmatmul.mubr.f32.gmra.mxu0 %v45
  %v113 = vpop.f32.mrf.mxu0
  %v114 = vadd.f32 %v36, %v113
  %v115 = vpop.f32.mrf.mxu0
  %v116 = vadd.f32 %v40, %v115
  %117 = vdwg.mxu0
  %v118 = vmax.f32 %v114, 0.0
  %v119 = vmax.f32 %v116, 0.0
  %v120 = vld [vmem:[%s3] sm:$0xff]
  %v121 = vld [vmem:[%s3 + $0x8] sm:$0xff]
  %v122 = vld [vmem:[%s3 + $0x10] sm:$0xff]
  %v123 = vld [vmem:[%s3 + $0x18] sm:$0xff]
  %v124 = vld [vmem:[%s3 + $0x20] sm:$0xff]
  %v125 = vld [vmem:[%s3 + $0x28] sm:$0xff]
  %v126 = vld [vmem:[%s3 + $0x30] sm:$0xff]
  %v127 = vld [vmem:[%s3 + $0x38] sm:$0xff]
  %v128 = vld [vmem:[%s3 + $0x40] sm:$0xff]
  %v129 = vld [vmem:[%s3 + $0x48] sm:$0xff]
  %v130 = vld [vmem:[%s3 + $0x50] sm:$0xff]
  %v131 = vld [vmem:[%s3 + $0x58] sm:$0xff]
  %v132 = vld [vmem:[%s3 + $0x60] sm:$0xff]
  %v133 = vld [vmem:[%s3 + $0x68] sm:$0xff]
  %v134 = vld [vmem:[%s3 + $0x70] sm:$0xff]
  %v135 = vld [vmem:[%s3 + $0x78] sm:$0xff]
  %v136 = vld [vmem:[%s3 + $0x80] sm:$0xff]
  %v137 = vld [vmem:[%s3 + $0x88] sm:$0xff]
  %v138 = vld [vmem:[%s3 + $0x90] sm:$0xff]
  %v139 = vld [vmem:[%s3 + $0x98] sm:$0xff]
  %v140 = vld [vmem:[%s3 + $0xa0] sm:$0xff]
  %v141 = vld [vmem:[%s3 + $0xa8] sm:$0xff]
  %v142 = vld [vmem:[%s3 + $0xb0] sm:$0xff]
  %v143 = vld [vmem:[%s3 + $0xb8] sm:$0xff]
  %v144 = vld [vmem:[%s3 + $0xc0] sm:$0xff]
  %v145 = vld [vmem:[%s3 + $0xc8] sm:$0xff]
  %v146 = vld [vmem:[%s3 + $0xd0] sm:$0xff]
  %v147 = vld [vmem:[%s3 + $0xd8] sm:$0xff]
  %v148 = vld [vmem:[%s3 + $0xe0] sm:$0xff]
  %v149 = vld [vmem:[%s3 + $0xe8] sm:$0xff]
  %v150 = vld [vmem:[%s3 + $0xf0] sm:$0xff]
  %v151 = vld [vmem:[%s3 + $0xf8] sm:$0xff]
  %v152 = vld [vmem:[%s4] sm:$0x1]
  %v154 = vlaneseq
  %v155 = vshrl.u32 %v154, 7
  %v156 = vsub.s32 0, %v155
  %v157 = vrot.slane %v152, %v156
  %159 = vmatprep.subr.mxu0 0.0
  %160 = vmatpush1.msra.mxu0 %v135
  %161 = vmatprep.subr.mxu0 0.0
  %162 = vmatpush1.msra.mxu0 %v134
  %163 = vmatprep.subr.mxu0 0.0
  %164 = vmatpush1.msra.mxu0 %v133
  %165 = vmatprep.subr.mxu0 0.0
  %166 = vmatpush1.msra.mxu0 %v132
  %167 = vmatprep.subr.mxu0 0.0
  %168 = vmatpush1.msra.mxu0 %v131
  %169 = vmatprep.subr.mxu0 0.0
  %170 = vmatpush1.msra.mxu0 %v130
  %171 = vmatprep.subr.mxu0 0.0
  %172 = vmatpush1.msra.mxu0 %v129
  %173 = vmatprep.subr.mxu0 0.0
  %174 = vmatpush1.msra.mxu0 %v128
  %175 = vmatprep.subr.mxu0 0.0
  %176 = vmatpush1.msra.mxu0 %v127
  %177 = vmatprep.subr.mxu0 0.0
  %178 = vmatpush1.msra.mxu0 %v126
  %179 = vmatprep.subr.mxu0 0.0
  %180 = vmatpush1.msra.mxu0 %v125
  %181 = vmatprep.subr.mxu0 0.0
  %182 = vmatpush1.msra.mxu0 %v124
  %183 = vmatprep.subr.mxu0 0.0
  %184 = vmatpush1.msra.mxu0 %v123
  %185 = vmatprep.subr.mxu0 0.0
  %186 = vmatpush1.msra.mxu0 %v122
  %187 = vmatprep.subr.mxu0 0.0
  %188 = vmatpush1.msra.mxu0 %v121
  %189 = vmatprep.subr.mxu0 0.0
  %190 = vmatpush1.msra.mxu0 %v120
  %191 = vmatprep.subr.mxu0 0.0
  %192 = vmatpush2.msra.mxu0 %v151
  %193 = vmatprep.subr.mxu0 0.0
  %194 = vmatpush2.msra.mxu0 %v150
  %195 = vmatprep.subr.mxu0 0.0
  %196 = vmatpush2.msra.mxu0 %v149
  %197 = vmatprep.subr.mxu0 0.0
  %198 = vmatpush2.msra.mxu0 %v148
  %199 = vmatprep.subr.mxu0 0.0
  %200 = vmatpush2.msra.mxu0 %v147
  %201 = vmatprep.subr.mxu0 0.0
  %202 = vmatpush2.msra.mxu0 %v146
  %203 = vmatprep.subr.mxu0 0.0
  %204 = vmatpush2.msra.mxu0 %v145
  %205 = vmatprep.subr.mxu0 0.0
  %206 = vmatpush2.msra.mxu0 %v144
  %207 = vmatprep.subr.mxu0 0.0
  %208 = vmatpush2.msra.mxu0 %v143
  %209 = vmatprep.subr.mxu0 0.0
  %210 = vmatpush2.msra.mxu0 %v142
  %211 = vmatprep.subr.mxu0 0.0
  %212 = vmatpush2.msra.mxu0 %v141
  %213 = vmatprep.subr.mxu0 0.0
  %214 = vmatpush2.msra.mxu0 %v140
  %215 = vmatprep.subr.mxu0 0.0
  %216 = vmatpush2.msra.mxu0 %v139
  %217 = vmatprep.subr.mxu0 0.0
  %218 = vmatpush2.msra.mxu0 %v138
  %219 = vmatprep.subr.mxu0 0.0
  %220 = vmatpush2.msra.mxu0 %v137
  %221 = vmatprep.subr.mxu0 0.0
  %222 = vmatpush2.msra.mxu0 %v136
  %223 = vmatprep.mubr.f32.mxu0 %v119
  %224 = vmatmul.mubr.f32.gmra.mxu0 %v118
  %v225 = vpop.f32.mrf.mxu0
  %v226 = vadd.f32 %v157, %v225
  %v227 = vpop.f32.mrf.mxu0
  %228 = vdwg.mxu0
  %v229 = vmax.f32 %v226, 0.0
  %v230 = vld [vmem:[%s5] sm:$0xff]
  %v231 = vld [vmem:[%s5 + $0x8] sm:$0xff]
  %v232 = vld [vmem:[%s5 + $0x10] sm:$0xff]
  %v233 = vld [vmem:[%s5 + $0x18] sm:$0xff]
  %v234 = vld [vmem:[%s5 + $0x20] sm:$0xff]
  %v235 = vld [vmem:[%s5 + $0x28] sm:$0xff]
  %v236 = vld [vmem:[%s5 + $0x30] sm:$0xff]
  %v237 = vld [vmem:[%s5 + $0x38] sm:$0xff]
  %v238 = vld [vmem:[%s6] sm:$0x1]
  %v240 = vlaneseq
  %v241 = vshrl.u32 %v240, 7
  %v242 = vsub.s32 0, %v241
  %v243 = vrot.slane %v238, %v242
  %vm245 = vcmask 523264
  %v247 = vsel %vm245, %v229, 0
  %249 = vmatprep.subr.mxu0 0.0
  %250 = vmatpush1.msra.mxu0 0.0
  %251 = vmatprep.subr.mxu0 0.0
  %252 = vmatpush1.msra.mxu0 0.0
  %253 = vmatprep.subr.mxu0 0.0
  %254 = vmatpush1.msra.mxu0 0.0
  %255 = vmatprep.subr.mxu0 0.0
  %256 = vmatpush1.msra.mxu0 0.0
  %257 = vmatprep.subr.mxu0 0.0
  %258 = vmatpush1.msra.mxu0 0.0
  %259 = vmatprep.subr.mxu0 0.0
  %260 = vmatpush1.msra.mxu0 0.0
  %261 = vmatprep.subr.mxu0 0.0
  %262 = vmatpush1.msra.mxu0 0.0
  %263 = vmatprep.subr.mxu0 0.0
  %264 = vmatpush1.msra.mxu0 0.0
  %265 = vmatprep.subr.mxu0 0.0
  %266 = vmatpush1.msra.mxu0 %v237
  %267 = vmatprep.subr.mxu0 0.0
  %268 = vmatpush1.msra.mxu0 %v236
  %269 = vmatprep.subr.mxu0 0.0
  %270 = vmatpush1.msra.mxu0 %v235
  %271 = vmatprep.subr.mxu0 0.0
  %272 = vmatpush1.msra.mxu0 %v234
  %273 = vmatprep.subr.mxu0 0.0
  %274 = vmatpush1.msra.mxu0 %v233
  %275 = vmatprep.subr.mxu0 0.0
  %276 = vmatpush1.msra.mxu0 %v232
  %277 = vmatprep.subr.mxu0 0.0
  %278 = vmatpush1.msra.mxu0 %v231
  %279 = vmatprep.subr.mxu0 0.0
  %280 = vmatpush1.msra.mxu0 %v230
  %281 = vmatprep.subr.mxu0 0.0
  %282 = vmatpush2.msra.mxu0 0.0
  %283 = vmatprep.subr.mxu0 0.0
  %284 = vmatpush2.msra.mxu0 0.0
  %285 = vmatprep.subr.mxu0 0.0
  %286 = vmatpush2.msra.mxu0 0.0
  %287 = vmatprep.subr.mxu0 0.0
  %288 = vmatpush2.msra.mxu0 0.0
  %289 = vmatprep.subr.mxu0 0.0
  %290 = vmatpush2.msra.mxu0 0.0
  %291 = vmatprep.subr.mxu0 0.0
  %292 = vmatpush2.msra.mxu0 0.0
  %293 = vmatprep.subr.mxu0 0.0
  %294 = vmatpush2.msra.mxu0 0.0
  %295 = vmatprep.subr.mxu0 0.0
  %296 = vmatpush2.msra.mxu0 0.0
  %297 = vmatprep.subr.mxu0 0.0
  %298 = vmatpush2.msra.mxu0 0.0
  %299 = vmatprep.subr.mxu0 0.0
  %300 = vmatpush2.msra.mxu0 0.0
  %301 = vmatprep.subr.mxu0 0.0
  %302 = vmatpush2.msra.mxu0 0.0
  %303 = vmatprep.subr.mxu0 0.0
  %304 = vmatpush2.msra.mxu0 0.0
  %305 = vmatprep.subr.mxu0 0.0
  %306 = vmatpush2.msra.mxu0 0.0
  %307 = vmatprep.subr.mxu0 0.0
  %308 = vmatpush2.msra.mxu0 0.0
  %309 = vmatprep.subr.mxu0 0.0
  %310 = vmatpush2.msra.mxu0 0.0
  %311 = vmatprep.subr.mxu0 0.0
  %312 = vmatpush2.msra.mxu0 0.0
  %313 = vmatprep.mubr.f32.mxu0 0.0
  %314 = vmatmul.mubr.f32.gmra.mxu0 %v247
  %v315 = vpop.f32.mrf.mxu0
  %v316 = vadd.f32 %v243, %v315
  %v317 = vpop.f32.mrf.mxu0
  %318 = vdwg.mxu0
  %vm319 = vcmask 15360
  %320 = vst.msk [vmem:[%s7] sm:$0xff] %vm319, %v316
  // Predicated region
  $region30: #{tpu_custom_call.1} parent=0 // pred_check
    _
  $region31: #{tpu_custom_call.1} parent=0 // pred_check_branch
    %322 = sbr.rel (0) target = $region33
  $region32: #{tpu_custom_call.1} parent=0 // pred_region
    _
  $region33: #{tpu_custom_call.1} parent=0 // pred_fallthru
    _
  // Predicated region
  $region34: #{tpu_custom_call.1} parent=0 // pred_check
    _
  $region35: #{tpu_custom_call.1} parent=0 // pred_check_branch
    %324 = sbr.rel (0) target = $region37
  $region36: #{tpu_custom_call.1} parent=0 // pred_region
    _
  $region37: #{tpu_custom_call.1} parent=0 // pred_fallthru
    _

</llo_original>
